<compile_context>
chip_gen: v5e
topology: v5e:2x2
jax: 0.10.0
libtpu: 0.0.40
codegen_flags: <defaults>
</compile_context>

<pallas_src>
import jax
import jax.numpy as jnp
from jax import lax
from jax.experimental import pallas as pl
from jax.experimental.pallas import tpu as pltpu


def _attention_step_kernel(ids_ref, table_ref, hid_ref, enc_ref, w_ref, b_ref,
                           out_ref, attnw_ref):
    """One decode step, fully fused: embedding gather -> softmax -> attention -> linear+relu."""
    B = ids_ref.shape[0]
    V, H = table_ref.shape

    # ---- Embedding lookup fused in-kernel: one-hot (B, V) @ table (V, H) on the MXU.
    ids = ids_ref[...]                                            # (B, 1) int32
    vocab_iota = lax.broadcasted_iota(jnp.int32, (B, V), 1)       # (B, V)
    onehot = (vocab_iota == ids).astype(jnp.float32)              # (B, V), exact in f32
    # TODO(synk): optionally feed bf16 operands to the MXU to cut pass count if tolerance allows.
    emb = jnp.dot(onehot, table_ref[...],
                  preferred_element_type=jnp.float32)             # (B, H)
    # Dropout: identity in eval mode.

    hid = hid_ref[...]                                            # (B, H) -- layer 0 only

    # ---- softmax over concat([emb, hid], 1): build the (B, 2H) slab once.
    cat = jnp.concatenate([emb, hid], axis=1)                     # lane shift rides the XLU slot
    m = jnp.max(cat, axis=1, keepdims=True)                       # (B, 1)
    e_cat = jnp.exp(cat - m)                                      # (B, 2H)
    recip = pl.reciprocal(jnp.sum(e_cat, axis=1, keepdims=True),
                          approx=True)                            # EUP vrcp
    aw = e_cat * recip                                            # (B, 2H)
    attnw_ref[...] = aw                                           # single full-width store

    # ---- attn_applied = attn_weights @ encoder_outputs : ONE MXU matmul over K = 2H.
    applied = jnp.dot(aw, enc_ref[...],
                      preferred_element_type=jnp.float32)         # (B, H)

    # ---- output = relu(cat([emb, applied], 1) @ W.T + b) : ONE dot over K = 2H, W untransposed.
    x = jnp.concatenate([emb, applied], axis=1)                   # (B, 2H)
    dn = (((1,), (1,)), ((), ()))                                 # contract dim 1 with dim 1
    out = (lax.dot_general(x, w_ref[...], dn, preferred_element_type=jnp.float32)
           + b_ref[...])                                          # (B, H)
    out_ref[...] = jnp.maximum(out, 0.0)


def _attention_steps_call(ids, hid0, encoder_outputs, embedding_table, combine_w, combine_b2d):
    """Grid-amortized call: one pallas_call over T decode steps; weights stay VMEM-resident."""
    T, B, _ = ids.shape
    V, H = embedding_table.shape
    return pl.pallas_call(
        _attention_step_kernel,
        out_shape=(
            jax.ShapeDtypeStruct((T, B, H), jnp.float32),         # combined output per step
            jax.ShapeDtypeStruct((T, B, 2 * H), jnp.float32),     # attn weights per step
        ),
        grid=(T,),
        in_specs=[
            pl.BlockSpec((None, B, 1), lambda t: (t, 0, 0)),      # per-step token ids
            pl.BlockSpec((V, H), lambda t: (0, 0)),               # embedding table (resident)
            pl.BlockSpec((None, B, H), lambda t: (t, 0, 0)),      # per-step hidden[0]
            pl.BlockSpec((2 * H, H), lambda t: (0, 0)),           # encoder outputs (resident)
            pl.BlockSpec((H, 2 * H), lambda t: (0, 0)),           # combine weight (resident)
            pl.BlockSpec((1, H), lambda t: (0, 0)),               # combine bias (resident)
        ],
        out_specs=(
            pl.BlockSpec((None, B, H), lambda t: (t, 0, 0)),
            pl.BlockSpec((None, B, 2 * H), lambda t: (t, 0, 0)),
        ),
        compiler_params=pltpu.CompilerParams(
            dimension_semantics=("parallel",)),                   # steps independent -> megacore OK
    )(ids, embedding_table, hid0, encoder_outputs, combine_w, combine_b2d)


def _attention_forward(token_ids, hidden, encoder_outputs,
                       embedding_table, combine_w, combine_b):
    """Single-step forward matching the PyTorch module.

    token_ids:        (1, B)  int token indices
    hidden:           (n_layers, B, H) f32
    encoder_outputs:  (2H, H) f32
    embedding_table:  (input_size, H) f32
    combine_w:        (H, 2H) f32   (PyTorch Linear weight, y = x @ W.T + b)
    combine_b:        (H,)    f32
    returns: (output (1, B, H), hidden, attn_weights (B, 2H))
    """
    B = token_ids.shape[-1]
    ids = token_ids[0].astype(jnp.int32).reshape(1, B, 1)         # (T=1, B, 1)
    hid0 = hidden[0][None]                                        # only layer 0 is DMA'd
    out, attnw = _attention_steps_call(
        ids, hid0, encoder_outputs, embedding_table, combine_w, combine_b.reshape(1, -1))
    return out, hidden, attnw[0]


def _attention_forward_steps(token_ids_steps, hidden0_steps, encoder_outputs,
                             embedding_table, combine_w, combine_b):
    """Amortized entry: T independent decode steps (their own ids and hidden[0]) in ONE launch."""
    T, B = token_ids_steps.shape
    ids = token_ids_steps.astype(jnp.int32).reshape(T, B, 1)
    return _attention_steps_call(
        ids, hidden0_steps, encoder_outputs, embedding_table, combine_w, combine_b.reshape(1, -1))


attention_forward = jax.jit(_attention_forward)
attention_forward_steps = jax.jit(_attention_forward_steps)


if __name__ == "__main__":
    key = jax.random.PRNGKey(0)
    k1, k2, k3, k4, k5, k6, k7, k8 = jax.random.split(key, 8)

    input_size = 64      # vocab size
    hidden_size = 32
    batch = 8
    n_layers = 2
    n_steps = 4

    # Deterministic synthetic parameters (shapes from the module __init__).
    embedding_table = jax.random.normal(k1, (input_size, hidden_size), jnp.float32)
    combine_w = jax.random.normal(k2, (hidden_size, 2 * hidden_size), jnp.float32) * 0.1
    combine_b = jax.random.normal(k3, (hidden_size,), jnp.float32) * 0.1

    # Single-step inputs (module signature).
    token_ids = jax.random.randint(k4, (1, batch), 0, input_size, jnp.int32)
    hidden = jax.random.normal(k5, (n_layers, batch, hidden_size), jnp.float32)
    encoder_outputs = jax.random.normal(k6, (2 * hidden_size, hidden_size), jnp.float32)

    out, hid, attnw = attention_forward(
        token_ids, hidden, encoder_outputs, embedding_table, combine_w, combine_b)
    jax.block_until_ready((out, hid, attnw))

    # Pure-JAX reference (single step).
    emb_ref = jnp.take(embedding_table, token_ids, axis=0)[0]
    cat_ref = jnp.concatenate([emb_ref, hidden[0]], axis=1)
    attnw_ref = jax.nn.softmax(cat_ref, axis=1)
    applied_ref = attnw_ref @ encoder_outputs
    out_ref = jax.nn.relu(
        jnp.concatenate([emb_ref, applied_ref], axis=1) @ combine_w.T + combine_b)[None, ...]

    assert out.shape == (1, batch, hidden_size)
    assert attnw.shape == (batch, 2 * hidden_size)
    assert hid.shape == hidden.shape
    # Tolerances account for the EUP approximate reciprocal in the softmax normalization.
    assert jnp.allclose(out, out_ref, atol=2e-3, rtol=2e-3)
    assert jnp.allclose(attnw, attnw_ref, atol=2e-3, rtol=2e-3)

    # Amortized multi-step path: T decode steps (each with its own ids / hidden[0]) in one launch.
    steps_ids = jax.random.randint(k7, (n_steps, batch), 0, input_size, jnp.int32)
    steps_hidden0 = jax.random.normal(k8, (n_steps, batch, hidden_size), jnp.float32)
    outs, attnws = attention_forward_steps(
        steps_ids, steps_hidden0, encoder_outputs, embedding_table, combine_w, combine_b)
    jax.block_until_ready((outs, attnws))

    for t in range(n_steps):
        emb_t = jnp.take(embedding_table, steps_ids[t], axis=0)
        cat_t = jnp.concatenate([emb_t, steps_hidden0[t]], axis=1)
        aw_t = jax.nn.softmax(cat_t, axis=1)
        ap_t = aw_t @ encoder_outputs
        o_t = jax.nn.relu(
            jnp.concatenate([emb_t, ap_t], axis=1) @ combine_w.T + combine_b)
        assert jnp.allclose(outs[t], o_t, atol=2e-3, rtol=2e-3)
        assert jnp.allclose(attnws[t], aw_t, atol=2e-3, rtol=2e-3)

    print("KERNEL_OK")
</pallas_src>

<mosaic_0001>
module attributes {stable_mosaic.version = 11 : i64} {
  func.func @_attention_step_kernel(%arg0: i32, %arg1: memref<1x8x1xi32, #tpu.memory_space<vmem>>, %arg2: memref<64x32xf32, #tpu.memory_space<vmem>>, %arg3: memref<1x8x32xf32, #tpu.memory_space<vmem>>, %arg4: memref<64x32xf32, #tpu.memory_space<vmem>>, %arg5: memref<32x64xf32, #tpu.memory_space<vmem>>, %arg6: memref<1x32xf32, #tpu.memory_space<vmem>>, %arg7: memref<1x8x32xf32, #tpu.memory_space<vmem>>, %arg8: memref<1x8x64xf32, #tpu.memory_space<vmem>>) attributes {dimension_semantics = [#tpu.dimension_semantics<parallel>], iteration_bounds = array<i64: 1>, scalar_prefetch = 0 : i64, scratch_operands = 0 : i64, tpu.core_type = #tpu.core_type<tc>, window_params = [{transform_indices = @transform_0, window_bounds = array<i64: 1, 8, 1>}, {pipeline_mode = #tpu.pipeline_mode<synchronous>, transform_indices = @transform_1, window_bounds = array<i64: 64, 32>}, {transform_indices = @transform_2, window_bounds = array<i64: 1, 8, 32>}, {pipeline_mode = #tpu.pipeline_mode<synchronous>, transform_indices = @transform_3, window_bounds = array<i64: 64, 32>}, {pipeline_mode = #tpu.pipeline_mode<synchronous>, transform_indices = @transform_4, window_bounds = array<i64: 32, 64>}, {pipeline_mode = #tpu.pipeline_mode<synchronous>, transform_indices = @transform_5, window_bounds = array<i64: 1, 32>}, {transform_indices = @transform_6, window_bounds = array<i64: 1, 8, 32>}, {transform_indices = @transform_7, window_bounds = array<i64: 1, 8, 64>}]} {
    %c0 = arith.constant 0 : index
    %c0_0 = arith.constant 0 : index
    %c0_1 = arith.constant 0 : index
    %0 = vector.load %arg1[%c0, %c0_0, %c0_1] : memref<1x8x1xi32, #tpu.memory_space<vmem>>, vector<1x8x1xi32>
    %1 = vector.shape_cast %0 : vector<1x8x1xi32> to vector<8x1xi32>
    %2 = tpu.iota {dimensions = array<i32: 1>} : vector<8x64xi32>
    %3 = vector.broadcast %1 : vector<8x1xi32> to vector<8x64xi32>
    %4 = arith.cmpi eq, %2, %3 : vector<8x64xi32>
    %5 = arith.extui %4 : vector<8x64xi1> to vector<8x64xi32>
    %6 = arith.sitofp %5 : vector<8x64xi32> to vector<8x64xf32>
    %c0_2 = arith.constant 0 : index
    %c0_3 = arith.constant 0 : index
    %7 = vector.load %arg2[%c0_2, %c0_3] : memref<64x32xf32, #tpu.memory_space<vmem>>, vector<64x32xf32>
    %cst = arith.constant dense<0.000000e+00> : vector<8x32xf32>
    %8 = tpu.matmul %6, %7, %cst {dimension_numbers = #tpu.dot_dimension_numbers<[1], [0], [0], [1], [0, 0, 1, 1], [], []>} : vector<8x64xf32>, vector<64x32xf32>, vector<8x32xf32> -> vector<8x32xf32>
    %c0_4 = arith.constant 0 : index
    %c0_5 = arith.constant 0 : index
    %c0_6 = arith.constant 0 : index
    %9 = vector.load %arg3[%c0_4, %c0_5, %c0_6] : memref<1x8x32xf32, #tpu.memory_space<vmem>>, vector<1x8x32xf32>
    %10 = vector.shape_cast %9 : vector<1x8x32xf32> to vector<8x32xf32>
    %11 = tpu.concatenate %8, %10 in 1 : vector<8x32xf32>, vector<8x32xf32> -> vector<8x64xf32>
    %cst_7 = arith.constant dense<0xFF800000> : vector<8xf32>
    %12 = vector.multi_reduction <maximumf>, %11, %cst_7 [1] : vector<8x64xf32> to vector<8xf32>
    %13 = vector.shape_cast %12 : vector<8xf32> to vector<8x1xf32>
    %14 = vector.broadcast %13 : vector<8x1xf32> to vector<8x64xf32>
    %15 = arith.subf %11, %14 : vector<8x64xf32>
    %16 = math.exp %15 : vector<8x64xf32>
    %cst_8 = arith.constant dense<0.000000e+00> : vector<8xf32>
    %17 = vector.multi_reduction <add>, %16, %cst_8 [1] : vector<8x64xf32> to vector<8xf32>
    %18 = vector.shape_cast %17 : vector<8xf32> to vector<8x1xf32>
    %19 = tpu.reciprocal %18 {approx = true} : vector<8x1xf32> -> vector<8x1xf32>
    %20 = vector.broadcast %19 : vector<8x1xf32> to vector<8x64xf32>
    %21 = arith.mulf %16, %20 : vector<8x64xf32>
    %c0_9 = arith.constant 0 : index
    %c0_10 = arith.constant 0 : index
    %c0_11 = arith.constant 0 : index
    %22 = vector.load %arg8[%c0_9, %c0_10, %c0_11] : memref<1x8x64xf32, #tpu.memory_space<vmem>>, vector<1x8x64xf32>
    %23 = vector.shape_cast %22 : vector<1x8x64xf32> to vector<8x64xf32>
    %24 = vector.shape_cast %21 : vector<8x64xf32> to vector<1x8x64xf32>
    tpu.vector_store %arg8[%c0_9, %c0_10, %c0_11], %24 {strides = array<i32>} : memref<1x8x64xf32, #tpu.memory_space<vmem>>, vector<1x8x64xf32>,
    %c0_12 = arith.constant 0 : index
    %c0_13 = arith.constant 0 : index
    %25 = vector.load %arg4[%c0_12, %c0_13] : memref<64x32xf32, #tpu.memory_space<vmem>>, vector<64x32xf32>
    %cst_14 = arith.constant dense<0.000000e+00> : vector<8x32xf32>
    %26 = tpu.matmul %21, %25, %cst_14 {dimension_numbers = #tpu.dot_dimension_numbers<[1], [0], [0], [1], [0, 0, 1, 1], [], []>} : vector<8x64xf32>, vector<64x32xf32>, vector<8x32xf32> -> vector<8x32xf32>
    %27 = tpu.concatenate %8, %26 in 1 : vector<8x32xf32>, vector<8x32xf32> -> vector<8x64xf32>
    %c0_15 = arith.constant 0 : index
    %c0_16 = arith.constant 0 : index
    %28 = vector.load %arg5[%c0_15, %c0_16] : memref<32x64xf32, #tpu.memory_space<vmem>>, vector<32x64xf32>
    %cst_17 = arith.constant dense<0.000000e+00> : vector<8x32xf32>
    %29 = tpu.matmul %27, %28, %cst_17 {dimension_numbers = #tpu.dot_dimension_numbers<[1], [1], [0], [0], [0, 0, 1, 0], [], []>} : vector<8x64xf32>, vector<32x64xf32>, vector<8x32xf32> -> vector<8x32xf32>
    %c0_18 = arith.constant 0 : index
    %c0_19 = arith.constant 0 : index
    %30 = vector.load %arg6[%c0_18, %c0_19] : memref<1x32xf32, #tpu.memory_space<vmem>>, vector<1x32xf32>
    %31 = vector.broadcast %30 : vector<1x32xf32> to vector<8x32xf32>
    %32 = arith.addf %29, %31 : vector<8x32xf32>
    %cst_20 = arith.constant 0.000000e+00 : f32
    %33 = vector.broadcast %cst_20 : f32 to vector<8x32xf32>
    %34 = arith.maximumf %32, %33 : vector<8x32xf32>
    %c0_21 = arith.constant 0 : index
    %c0_22 = arith.constant 0 : index
    %c0_23 = arith.constant 0 : index
    %35 = vector.load %arg7[%c0_21, %c0_22, %c0_23] : memref<1x8x32xf32, #tpu.memory_space<vmem>>, vector<1x8x32xf32>
    %36 = vector.shape_cast %35 : vector<1x8x32xf32> to vector<8x32xf32>
    %37 = vector.shape_cast %34 : vector<8x32xf32> to vector<1x8x32xf32>
    tpu.vector_store %arg7[%c0_21, %c0_22, %c0_23], %37 {strides = array<i32>} : memref<1x8x32xf32, #tpu.memory_space<vmem>>, vector<1x8x32xf32>,
    return
  }
  func.func @transform_0(%arg0: i32) -> (i32, i32, i32) {
    %c0_i32 = arith.constant 0 : i32
    %c0_i32_0 = arith.constant 0 : i32
    %c0_i32_1 = arith.constant 0 : i32
    return %arg0, %c0_i32, %c0_i32_0 : i32, i32, i32
  }
  func.func @transform_1(%arg0: i32) -> (i32, i32) {
    %c0_i32 = arith.constant 0 : i32
    %c0_i32_0 = arith.constant 0 : i32
    %c0_i32_1 = arith.constant 0 : i32
    return %c0_i32, %c0_i32_0 : i32, i32
  }
  func.func @transform_2(%arg0: i32) -> (i32, i32, i32) {
    %c0_i32 = arith.constant 0 : i32
    %c0_i32_0 = arith.constant 0 : i32
    %c0_i32_1 = arith.constant 0 : i32
    return %arg0, %c0_i32, %c0_i32_0 : i32, i32, i32
  }
  func.func @transform_3(%arg0: i32) -> (i32, i32) {
    %c0_i32 = arith.constant 0 : i32
    %c0_i32_0 = arith.constant 0 : i32
    %c0_i32_1 = arith.constant 0 : i32
    return %c0_i32, %c0_i32_0 : i32, i32
  }
  func.func @transform_4(%arg0: i32) -> (i32, i32) {
    %c0_i32 = arith.constant 0 : i32
    %c0_i32_0 = arith.constant 0 : i32
    %c0_i32_1 = arith.constant 0 : i32
    return %c0_i32, %c0_i32_0 : i32, i32
  }
  func.func @transform_5(%arg0: i32) -> (i32, i32) {
    %c0_i32 = arith.constant 0 : i32
    %c0_i32_0 = arith.constant 0 : i32
    %c0_i32_1 = arith.constant 0 : i32
    return %c0_i32, %c0_i32_0 : i32, i32
  }
  func.func @transform_6(%arg0: i32) -> (i32, i32, i32) {
    %c0_i32 = arith.constant 0 : i32
    %c0_i32_0 = arith.constant 0 : i32
    %c0_i32_1 = arith.constant 0 : i32
    return %arg0, %c0_i32, %c0_i32_0 : i32, i32, i32
  }
  func.func @transform_7(%arg0: i32) -> (i32, i32, i32) {
    %c0_i32 = arith.constant 0 : i32
    %c0_i32_0 = arith.constant 0 : i32
    %c0_i32_1 = arith.constant 0 : i32
    return %arg0, %c0_i32, %c0_i32_0 : i32, i32, i32
  }
}

</mosaic_0001>

<llo_original>
// kernel: _attention_forward.1
$region0: #{_attention_forward.1}
  #allocation0 [shape = 'u32[]', space=smem, size = 0x4, offset = 0x4, fixed_abs, tag = 'smem constant byte address 0x4 - core index']
  #allocation1 [shape = 'u32[72,128]{1,0:T(1,128)}', space=vmem, size = 0x9000, scoped, tag = 'internal scratch']
  %s0 = inlined_call_operand.vmem [shape: s32[1,8,1], index: 0, kind: input, shape index: {}]
  %s1 = inlined_call_operand.vmem [shape: f32[64,32], index: 1, kind: input, shape index: {}]
  %s2 = inlined_call_operand.vmem [shape: f32[1,8,32], index: 2, kind: input, shape index: {}]
  %s3 = inlined_call_operand.vmem [shape: f32[64,32], index: 3, kind: input, shape index: {}]
  %s4 = inlined_call_operand.vmem [shape: f32[32,64], index: 4, kind: input, shape index: {}]
  %s5 = inlined_call_operand.vmem [shape: f32[1,32], index: 5, kind: input, shape index: {}]
  %s6 = inlined_call_operand.hbm [shape: f32[1,8,32], index: 6, kind: output, shape index: {0}]
  %s7 = inlined_call_operand.hbm [shape: f32[1,8,64], index: 7, kind: output, shape index: {1}]
  %8 = xla_tuple %s6, %s7
  %s9 = sld [smem:[#allocation0]]
  $region42: #{_attention_forward.1} parent=0
    _
  %s11 = ssub.s32 1, %s9
  %s12 = scalar_select 0, %s11, %s9
  $region1: #{_attention_forward.1} parent=0
    #allocation2 [shape = 'u8[4096]{0}', space=vmem, size = 0x1000, scoped, tag = 'output window, operand 0, single buffered']
    #allocation3 [shape = 's32[1]{0}', space=sflag, size = 0x4, scoped, tag = 'scoped memory for _attention_forward.1']
    #allocation4 [shape = 'u8[4096]{0}', space=vmem, size = 0x1000, scoped, tag = 'output window, operand 1, single buffered']
    #allocation5 [shape = 's32[1]{0}', space=sflag, size = 0x4, scoped, tag = 'scoped memory for _attention_forward.1']
    %13 = vsyncpa [#allocation3], 0
    %14 = vsyncpa [#allocation5], 0
    // Predicated region
    $region2: #{_attention_forward.1} parent=1 // pred_check
      _
    $region3: #{_attention_forward.1} parent=1 // pred_check_branch
      %16 = sbr.rel (0) target = $region5
    $region4: #{_attention_forward.1} parent=1 // pred_region
      _
    $region5: #{_attention_forward.1} parent=1 // pred_fallthru
      _
    // Predicated region
    $region6: #{_attention_forward.1} parent=1 // pred_check
      _
    $region7: #{_attention_forward.1} parent=1 // pred_check_branch
      %18 = sbr.rel (0) target = $region9
    $region8: #{_attention_forward.1} parent=1 // pred_region
      _
    $region9: #{_attention_forward.1} parent=1 // pred_fallthru
      _
    // Predicated region
    $region10: #{_attention_forward.1} parent=1 // pred_check
      _
    $region11: #{_attention_forward.1} parent=1 // pred_check_branch
      %20 = sbr.rel (0) target = $region13
    $region12: #{_attention_forward.1} parent=1 // pred_region
      _
    $region13: #{_attention_forward.1} parent=1 // pred_fallthru
      _
    // Predicated region
    $region14: #{_attention_forward.1} parent=1 // pred_check
      _
    $region15: #{_attention_forward.1} parent=1 // pred_check_branch
      %22 = sbr.rel (0) target = $region17
    $region16: #{_attention_forward.1} parent=1 // pred_region
      _
    $region17: #{_attention_forward.1} parent=1 // pred_fallthru
      _
    // Predicated region
    $region18: #{_attention_forward.1} parent=1 // pred_check
      _
    $region19: #{_attention_forward.1} parent=1 // pred_check_branch
      %24 = sbr.rel (0) target = $region21
    $region20: #{_attention_forward.1} parent=1 // pred_region
      _
    $region21: #{_attention_forward.1} parent=1 // pred_fallthru
      _
    // Predicated region
    $region22: #{_attention_forward.1} parent=1 // pred_check
      _
    $region23: #{_attention_forward.1} parent=1 // pred_check_branch
      %26 = sbr.rel (0) target = $region25
    $region24: #{_attention_forward.1} parent=1 // pred_region
      _
    $region25: #{_attention_forward.1} parent=1 // pred_fallthru
      _
    %v27 = vld [vmem:[%s0] sm:$0xff]
    %v28 = vlaneseq
    %v29 = vand.u32 %v28, 127
    %30 = vset.pattern.permute.xlu0 0
    %31 = vperm.xlu0 %30, %v27
    %v32 = vpop.permute.xlu0 %31
    %vm33 = vcmp.eq.s32.totalorder %v29, %v32
    %v34 = vsel %vm33, 1, 0
    %v35 = vcvt.s32.f32 %v34
    %v36 = vld [vmem:[%s1] sm:$0xff]
    %v37 = vld [vmem:[%s1 + $0x8] sm:$0xff]
    %v38 = vld [vmem:[%s1 + $0x10] sm:$0xff]
    %v39 = vld [vmem:[%s1 + $0x18] sm:$0xff]
    %v40 = vld [vmem:[%s1 + $0x20] sm:$0xff]
    %v41 = vld [vmem:[%s1 + $0x28] sm:$0xff]
    %v42 = vld [vmem:[%s1 + $0x30] sm:$0xff]
    %v43 = vld [vmem:[%s1 + $0x38] sm:$0xff]
    %vm44 = vcmask 523264
    %v46 = vsel %vm44, %v35, 0
    %48 = vmatpush.msra.mxu0 0.0
    %49 = vmatpush.msra.mxu0 0.0
    %50 = vmatpush.msra.mxu0 0.0
    %51 = vmatpush.msra.mxu0 0.0
    %52 = vmatpush.msra.mxu0 0.0
    %53 = vmatpush.msra.mxu0 0.0
    %54 = vmatpush.msra.mxu0 0.0
    %55 = vmatpush.msra.mxu0 0.0
    %56 = vmatpush.msra.mxu0 %v43
    %57 = vmatpush.msra.mxu0 %v42
    %58 = vmatpush.msra.mxu0 %v41
    %59 = vmatpush.msra.mxu0 %v40
    %60 = vmatpush.msra.mxu0 %v39
    %61 = vmatpush.msra.mxu0 %v38
    %62 = vmatpush.msra.mxu0 %v37
    %63 = vmatpush.msra.mxu0 %v36
    %64 = vmatmul.f32.gmra.mxu0 %v46
    %v65 = vpop.f32.mrf.mxu0
    %v66 = vadd.f32 0.0, %v65
    %67 = vdwg.mxu0
    %v68 = vld [vmem:[%s2] sm:$0xff]
    %70 = vrot.lane.b32.xlu0 %v68, 32
    %v71 = vpop.permute.xlu0 %70
    %vm73 = vcmask 261120
    %v74 = vsel %vm73, %v66, %v71
    %v75 = vsel %vm44, %v74, -inf
    %76 = vmax.xlane.f32.xlu0 %v75
    %v77 = vpop.xlane.xlu0 %76
    %v78 = vsub.f32 %v74, %v77
    %v79 = vmul.f32 %v78, 1.442695
    %v80 = vpow.pop %v79
    %v81 = vsel %vm44, %v80, 0.0
    %82 = vadd.xlane.f32.xlu0 %v81
    %v83 = vpop.xlane.xlu0 %82
    %v84 = vrcp.pop %v83
    %v85 = vmul.f32 %v80, %v84
    %86 = vst.msk [vmem:[#allocation4] sm:$0xff] %vm44, %v85
    %v87 = vld [vmem:[%s3] sm:$0xff]
    %v88 = vld [vmem:[%s3 + $0x8] sm:$0xff]
    %v89 = vld [vmem:[%s3 + $0x10] sm:$0xff]
    %v90 = vld [vmem:[%s3 + $0x18] sm:$0xff]
    %v91 = vld [vmem:[%s3 + $0x20] sm:$0xff]
    %v92 = vld [vmem:[%s3 + $0x28] sm:$0xff]
    %v93 = vld [vmem:[%s3 + $0x30] sm:$0xff]
    %v94 = vld [vmem:[%s3 + $0x38] sm:$0xff]
    %v96 = vsel %vm44, %v85, 0
    %98 = vmatpush.msra.mxu0 0.0
    %99 = vmatpush.msra.mxu0 0.0
    %100 = vmatpush.msra.mxu0 0.0
    %101 = vmatpush.msra.mxu0 0.0
    %102 = vmatpush.msra.mxu0 0.0
    %103 = vmatpush.msra.mxu0 0.0
    %104 = vmatpush.msra.mxu0 0.0
    %105 = vmatpush.msra.mxu0 0.0
    %106 = vmatpush.msra.mxu0 %v94
    %107 = vmatpush.msra.mxu0 %v93
    %108 = vmatpush.msra.mxu0 %v92
    %109 = vmatpush.msra.mxu0 %v91
    %110 = vmatpush.msra.mxu0 %v90
    %111 = vmatpush.msra.mxu0 %v89
    %112 = vmatpush.msra.mxu0 %v88
    %113 = vmatpush.msra.mxu0 %v87
    %114 = vmatmul.f32.gmra.mxu0 %v96
    %v115 = vpop.f32.mrf.mxu0
    %v116 = vadd.f32 0.0, %v115
    %117 = vdwg.mxu0
    %119 = vrot.lane.b32.xlu0 %v116, 32
    %v120 = vpop.permute.xlu0 %119
    %v122 = vsel %vm73, %v66, %v120
    %v123 = vld [vmem:[%s4] sm:$0xff]
    %v124 = vld [vmem:[%s4 + $0x8] sm:$0xff]
    %v125 = vld [vmem:[%s4 + $0x10] sm:$0xff]
    %v126 = vld [vmem:[%s4 + $0x18] sm:$0xff]
    %v127 = vld [vmem:[%s5] sm:$0x1]
    %v129 = vperm.slane %v127, 0
    %v132 = vsel %vm44, %v122, 0
    %v135 = vsel %vm44, %v123, 0
    %v138 = vsel %vm44, %v124, 0
    %v141 = vsel %vm44, %v125, 0
    %v144 = vsel %vm44, %v126, 0
    %146 = vmatpush.xpose.msra.mxu0 0.0
    %147 = vmatpush.xpose.msra.mxu0 0.0
    %148 = vmatpush.xpose.msra.mxu0 0.0
    %149 = vmatpush.xpose.msra.mxu0 0.0
    %150 = vmatpush.xpose.msra.mxu0 0.0
    %151 = vmatpush.xpose.msra.mxu0 0.0
    %152 = vmatpush.xpose.msra.mxu0 0.0
    %153 = vmatpush.xpose.msra.mxu0 0.0
    %154 = vmatpush.xpose.msra.mxu0 0.0
    %155 = vmatpush.xpose.msra.mxu0 0.0
    %156 = vmatpush.xpose.msra.mxu0 0.0
    %157 = vmatpush.xpose.msra.mxu0 0.0
    %158 = vmatpush.xpose.msra.mxu0 %v144
    %159 = vmatpush.xpose.msra.mxu0 %v141
    %160 = vmatpush.xpose.msra.mxu0 %v138
    %161 = vmatpush.xpose.msra.mxu0 %v135
    %162 = vmatmul.f32.gmra.mxu0 %v132
    %v163 = vpop.f32.mrf.mxu0
    %v164 = vadd.f32 %v129, %v163
    %165 = vdwg.mxu0
    %v166 = vmax.f32 %v164, 0.0
    %167 = vst.msk [vmem:[#allocation2] sm:$0xff] %vm73, %v166
    // Predicated region
    $region26: #{_attention_forward.1} parent=1 // pred_check
      _
    $region27: #{_attention_forward.1} parent=1 // pred_check_branch
      %169 = sbr.rel (0) target = $region29
    $region28: #{_attention_forward.1} parent=1 // pred_region
      %171 = vsyncadd [#allocation3], 0
      %s173 = sshll.u32 [#allocation2], 4
      %s174 = int_to_ptr.vmem [resolvable:$true] %s173
      %s175 = sshll.u32 %s6, 4
      %s176 = int_to_ptr.hbm [resolvable:$true] %s175
      %178 = dma.vmem_to_hbm [thread:$0]  %s174, 128, %s176, [#allocation3]
    $region29: #{_attention_forward.1} parent=1 // pred_fallthru
      _
    // Predicated region
    $region30: #{_attention_forward.1} parent=1 // pred_check
      _
    $region31: #{_attention_forward.1} parent=1 // pred_check_branch
      %180 = sbr.rel (0) target = $region33
    $region32: #{_attention_forward.1} parent=1 // pred_region
      %182 = vsyncadd [#allocation5], 0
      %s184 = sshll.u32 [#allocation4], 4
      %s185 = int_to_ptr.vmem [resolvable:$true] %s184
      %s186 = sshll.u32 %s7, 4
      %s187 = int_to_ptr.hbm [resolvable:$true] %s186
      %189 = dma.vmem_to_hbm [thread:$0]  %s185, 128, %s187, [#allocation5]
    $region33: #{_attention_forward.1} parent=1 // pred_fallthru
      _
    // Predicated region
    $region34: #{_attention_forward.1} parent=1 // pred_check
      _
    $region35: #{_attention_forward.1} parent=1 // pred_check_branch
      %191 = sbr.rel (0) target = $region37
    $region36: #{_attention_forward.1} parent=1 // pred_region
      %193 = dma.done [#allocation3], 128
    $region37: #{_attention_forward.1} parent=1 // pred_fallthru
      _
    // Predicated region
    $region38: #{_attention_forward.1} parent=1 // pred_check
      _
    $region39: #{_attention_forward.1} parent=1 // pred_check_branch
      %195 = sbr.rel (0) target = $region41
    $region40: #{_attention_forward.1} parent=1 // pred_region
      %197 = dma.done [#allocation5], 128
    $region41: #{_attention_forward.1} parent=1 // pred_fallthru
      _
    %198 = vsyncpa [#allocation3], 1
    %199 = vsyncpa [#allocation5], 1

</llo_original>
